<compile_context>
chip_gen: v7x
topology: tpu7x:2x2x1
jax: 0.10.0
libtpu: 0.0.40
codegen_flags: <defaults>
</compile_context>

<pallas_src>
import jax
import jax.numpy as jnp
from jax.experimental import pallas as pl
from jax.experimental.pallas import tpu as pltpu

_LANE = 128
_SUBLANE = 8


def _round_up(x, m):
    return (x + m - 1) // m * m


# ---------------------------------------------------------------------------
# Kernel
# ---------------------------------------------------------------------------
def mlp_softmax_kernel(x_ref, w1_ref, b1_ref, w2_ref, b2_ref, w3_ref, b3_ref,
                       o_ref):
    """Fused forward pass for one batch tile.

    x_ref : (TB, n_in)        VMEM, caller dtype (cast to bf16 for the MXU)
    wK_ref: (in, out)         VMEM, bf16, resident across all grid steps
    bK_ref: (1, out)          VMEM, f32
    o_ref : (TB, n_cls)       VMEM, f32
    """
    x = x_ref[...].astype(jnp.bfloat16)

    # Layer 1: Linear + ELU (alpha=1). Padded hidden cols stay exactly 0
    # (zero weight cols, zero bias) and ELU(0) = 0.
    h1 = jnp.dot(x, w1_ref[...], preferred_element_type=jnp.float32) + b1_ref[...]
    a1 = jnp.where(h1 > 0, h1, jnp.exp(jnp.minimum(h1, 0.0)) - 1.0)

    # Layer 2: Linear + ELU (alpha=1).
    h2 = jnp.dot(a1.astype(jnp.bfloat16), w2_ref[...],
                 preferred_element_type=jnp.float32) + b2_ref[...]
    a2 = jnp.where(h2 > 0, h2, jnp.exp(jnp.minimum(h2, 0.0)) - 1.0)

    # Layer 3: Linear + softmax over the (unpadded) class axis.
    logits = jnp.dot(a2.astype(jnp.bfloat16), w3_ref[...],
                     preferred_element_type=jnp.float32) + b3_ref[...]
    m = jnp.max(logits, axis=-1, keepdims=True)
    e = jnp.exp(logits - m)
    denom = jnp.sum(e, axis=-1, keepdims=True)
    # Exact reciprocal: rows sum to 1 to f32 rounding (approx=True caused the
    # previous normalization failure; the divide is off the critical path).
    # TODO(synk): on v6e/v7x the exp streams could run in bf16 if the EUP slot
    # ever saturates; kept f32 here so the same kernel is safe on v5e.
    o_ref[...] = (e / denom).astype(o_ref.dtype)


# ---------------------------------------------------------------------------
# Wrapper
# ---------------------------------------------------------------------------
def prepare_params(params):
    """Pad hidden dims to multiples of 128 and cast weights to bf16, ONCE.

    Zero padding is mathematically inert through Linear + ELU (ELU(0) = 0 and
    padded weight rows/cols are 0). The class axis is left unpadded. Biases
    stay f32.
    """
    w1, b1, w2, b2, w3, b3 = params
    n_in, n_h1 = w1.shape
    n_h2, n_cls = w2.shape[1], w3.shape[1]
    n_h1_p = _round_up(n_h1, _LANE)
    n_h2_p = _round_up(n_h2, _LANE)

    w1p = jnp.zeros((n_in, n_h1_p), jnp.bfloat16).at[:, :n_h1].set(
        w1.astype(jnp.bfloat16))
    b1p = jnp.zeros((1, n_h1_p), jnp.float32).at[:, :n_h1].set(b1)
    w2p = jnp.zeros((n_h1_p, n_h2_p), jnp.bfloat16).at[:n_h1, :n_h2].set(
        w2.astype(jnp.bfloat16))
    b2p = jnp.zeros((1, n_h2_p), jnp.float32).at[:, :n_h2].set(b2)
    w3p = jnp.zeros((n_h2_p, n_cls), jnp.bfloat16).at[:n_h2, :].set(
        w3.astype(jnp.bfloat16))
    b3p = b3.astype(jnp.float32)
    return (w1p, b1p, w2p, b2p, w3p, b3p)


def dnn_img_classifier(x, prepared_params, *, batch_tile=2048):
    """Run the fused MLP kernel, tiling over the batch dimension.

    `prepared_params` must come from prepare_params() (padding/casting is
    hoisted out of the per-call path).
    """
    w1p, b1p, w2p, b2p, w3p, b3p = prepared_params
    B, n_in = x.shape
    assert n_in == w1p.shape[0], "x feature dim must match W1 fan-in"
    n_cls = w3p.shape[1]

    # --- batch tile selection -------------------------------------------
    tile = min(batch_tile, _round_up(B, _SUBLANE))
    # Guarantee >= 2 grid steps whenever B permits, so the "parallel" batch
    # axis shards across both TensorCores on v7x (no-op on v5e/v6e).
    if B >= 2 * _SUBLANE:
        tile = min(tile, _round_up(pl.cdiv(B, 2), _SUBLANE))
    # Cap the tile so double-buffered x + out tiles (plus <0.5 MiB resident
    # weights) stay comfortably under the 32 MiB scoped VMEM limit (v7x has
    # only 64 MiB physical VMEM).
    bytes_per_row = n_in * x.dtype.itemsize + n_cls * 4
    vmem_budget = 24 * 1024 * 1024
    max_rows = max(_SUBLANE,
                   (vmem_budget // (2 * bytes_per_row)) // _SUBLANE * _SUBLANE)
    tile = _round_up(min(tile, max_rows), _SUBLANE)

    grid = (pl.cdiv(B, tile),)
    resident = lambda i: (0, 0)  # weights/biases stay resident every step

    out = pl.pallas_call(
        mlp_softmax_kernel,
        out_shape=jax.ShapeDtypeStruct((B, n_cls), jnp.float32),
        grid_spec=pltpu.PrefetchScalarGridSpec(
            num_scalar_prefetch=0,
            grid=grid,
            in_specs=[
                pl.BlockSpec((tile, n_in), lambda i: (i, 0)),  # x tile (no pad)
                pl.BlockSpec(w1p.shape, resident),             # W1 (bf16)
                pl.BlockSpec(b1p.shape, resident),             # b1
                pl.BlockSpec(w2p.shape, resident),             # W2 (bf16)
                pl.BlockSpec(b2p.shape, resident),             # b2
                pl.BlockSpec(w3p.shape, resident),             # W3 (bf16)
                pl.BlockSpec(b3p.shape, resident),             # b3
            ],
            # Unpadded class axis: masked store, but 12.8x fewer HBM bytes
            # than a 128-padded output plus a wrapper-side slice pass.
            out_specs=pl.BlockSpec((tile, n_cls), lambda i: (i, 0)),
        ),
        compiler_params=pltpu.CompilerParams(
            dimension_semantics=("parallel",),      # batch axis: megacore
            vmem_limit_bytes=32 * 1024 * 1024,
        ),
    )(x, w1p, b1p, w2p, b2p, w3p, b3p)

    return out


# ---------------------------------------------------------------------------
# Init + reference
# ---------------------------------------------------------------------------
def init_params(key, n_in, n_h1, n_h2, n_cls):
    """Deterministic init mirroring torch.nn.Linear's U(-1/sqrt(fan_in), +)."""
    def linear(k, fan_in, fan_out):
        kw, kb = jax.random.split(k)
        bound = 1.0 / jnp.sqrt(fan_in)
        w = jax.random.uniform(kw, (fan_in, fan_out), jnp.float32,
                               minval=-bound, maxval=bound)
        b = jax.random.uniform(kb, (1, fan_out), jnp.float32,
                               minval=-bound, maxval=bound)
        return w, b

    k1, k2, k3 = jax.random.split(key, 3)
    w1, b1 = linear(k1, n_in, n_h1)
    w2, b2 = linear(k2, n_h1, n_h2)
    w3, b3 = linear(k3, n_h2, n_cls)
    return (w1, b1, w2, b2, w3, b3)


def reference_forward(x, params):
    """Pure-JAX f32 reference replicating the PyTorch forward exactly."""
    w1, b1, w2, b2, w3, b3 = params
    h1 = x @ w1 + b1
    a1 = jnp.where(h1 > 0, h1, jnp.exp(jnp.minimum(h1, 0.0)) - 1.0)
    h2 = a1 @ w2 + b2
    a2 = jnp.where(h2 > 0, h2, jnp.exp(jnp.minimum(h2, 0.0)) - 1.0)
    logits = a2 @ w3 + b3
    return jax.nn.softmax(logits, axis=1)


if __name__ == "__main__":
    # Small shapes consistent with the module's forward:
    # x: (batch, n_input_feat); hidden sizes and classes kept small.
    batch, n_in, n_h1, n_h2, n_cls = 16, 64, 32, 32, 10

    key = jax.random.PRNGKey(0)
    kx, kp = jax.random.split(key)
    x = jax.random.normal(kx, (batch, n_in), jnp.float32)
    params = init_params(kp, n_in, n_h1, n_h2, n_cls)
    prepared = prepare_params(params)   # padded/bf16 weights, built once

    y = dnn_img_classifier(x, prepared)
    y = jax.block_until_ready(y)

    y_ref = reference_forward(x, params)
    assert y.shape == (batch, n_cls)
    assert bool(jnp.all(jnp.isfinite(y))), "output must be finite"
    # bf16 MXU operands with f32 accumulation -> compare vs f32 reference at 2e-2.
    assert jnp.allclose(y, y_ref, atol=2e-2, rtol=2e-2), "mismatch vs reference"
    # Exact softmax reciprocal -> rows sum to 1 to f32 rounding.
    assert jnp.allclose(jnp.sum(y, axis=1), 1.0, atol=1e-3), "rows must sum to 1"

    print("KERNEL_OK")
</pallas_src>

<mosaic_0001>
module attributes {stable_mosaic.version = 11 : i64} {
  func.func @mlp_softmax_kernel(%arg0: i32, %arg1: memref<8x64xf32, #tpu.memory_space<vmem>>, %arg2: memref<64x128xbf16, #tpu.memory_space<vmem>>, %arg3: memref<1x128xf32, #tpu.memory_space<vmem>>, %arg4: memref<128x128xbf16, #tpu.memory_space<vmem>>, %arg5: memref<1x128xf32, #tpu.memory_space<vmem>>, %arg6: memref<128x10xbf16, #tpu.memory_space<vmem>>, %arg7: memref<1x10xf32, #tpu.memory_space<vmem>>, %arg8: memref<8x10xf32, #tpu.memory_space<vmem>>) attributes {dimension_semantics = [#tpu.dimension_semantics<parallel>], iteration_bounds = array<i64: 2>, scalar_prefetch = 0 : i64, scratch_operands = 0 : i64, tpu.core_type = #tpu.core_type<tc>, window_params = [{transform_indices = @transform_0, window_bounds = array<i64: 8, 64>}, {pipeline_mode = #tpu.pipeline_mode<synchronous>, transform_indices = @transform_1, window_bounds = array<i64: 64, 128>}, {pipeline_mode = #tpu.pipeline_mode<synchronous>, transform_indices = @transform_2, window_bounds = array<i64: 1, 128>}, {pipeline_mode = #tpu.pipeline_mode<synchronous>, transform_indices = @transform_3, window_bounds = array<i64: 128, 128>}, {pipeline_mode = #tpu.pipeline_mode<synchronous>, transform_indices = @transform_4, window_bounds = array<i64: 1, 128>}, {pipeline_mode = #tpu.pipeline_mode<synchronous>, transform_indices = @transform_5, window_bounds = array<i64: 128, 10>}, {pipeline_mode = #tpu.pipeline_mode<synchronous>, transform_indices = @transform_6, window_bounds = array<i64: 1, 10>}, {transform_indices = @transform_7, window_bounds = array<i64: 8, 10>}]} {
    %c0 = arith.constant 0 : index
    %c0_0 = arith.constant 0 : index
    %0 = vector.load %arg1[%c0, %c0_0] : memref<8x64xf32, #tpu.memory_space<vmem>>, vector<8x64xf32>
    %1 = arith.truncf %0 : vector<8x64xf32> to vector<8x64xbf16>
    %c0_1 = arith.constant 0 : index
    %c0_2 = arith.constant 0 : index
    %2 = vector.load %arg2[%c0_1, %c0_2] : memref<64x128xbf16, #tpu.memory_space<vmem>>, vector<64x128xbf16>
    %cst = arith.constant dense<0.000000e+00> : vector<8x128xf32>
    %3 = tpu.matmul %1, %2, %cst {dimension_numbers = #tpu.dot_dimension_numbers<[1], [0], [0], [1], [0, 0, 1, 1], [], []>} : vector<8x64xbf16>, vector<64x128xbf16>, vector<8x128xf32> -> vector<8x128xf32>
    %c0_3 = arith.constant 0 : index
    %c0_4 = arith.constant 0 : index
    %4 = vector.load %arg3[%c0_3, %c0_4] : memref<1x128xf32, #tpu.memory_space<vmem>>, vector<1x128xf32>
    %5 = vector.broadcast %4 : vector<1x128xf32> to vector<8x128xf32>
    %6 = arith.addf %3, %5 : vector<8x128xf32>
    %cst_5 = arith.constant 0.000000e+00 : f32
    %7 = vector.broadcast %cst_5 : f32 to vector<8x128xf32>
    %8 = arith.cmpf ogt, %6, %7 : vector<8x128xf32>
    %cst_6 = arith.constant 0.000000e+00 : f32
    %9 = vector.broadcast %cst_6 : f32 to vector<8x128xf32>
    %10 = arith.minimumf %6, %9 : vector<8x128xf32>
    %11 = math.exp %10 : vector<8x128xf32>
    %cst_7 = arith.constant 1.000000e+00 : f32
    %12 = vector.broadcast %cst_7 : f32 to vector<8x128xf32>
    %13 = arith.subf %11, %12 : vector<8x128xf32>
    %14 = arith.select %8, %6, %13 : vector<8x128xi1>, vector<8x128xf32>
    %15 = arith.truncf %14 : vector<8x128xf32> to vector<8x128xbf16>
    %c0_8 = arith.constant 0 : index
    %c0_9 = arith.constant 0 : index
    %16 = vector.load %arg4[%c0_8, %c0_9] : memref<128x128xbf16, #tpu.memory_space<vmem>>, vector<128x128xbf16>
    %cst_10 = arith.constant dense<0.000000e+00> : vector<8x128xf32>
    %17 = tpu.matmul %15, %16, %cst_10 {dimension_numbers = #tpu.dot_dimension_numbers<[1], [0], [0], [1], [0, 0, 1, 1], [], []>} : vector<8x128xbf16>, vector<128x128xbf16>, vector<8x128xf32> -> vector<8x128xf32>
    %c0_11 = arith.constant 0 : index
    %c0_12 = arith.constant 0 : index
    %18 = vector.load %arg5[%c0_11, %c0_12] : memref<1x128xf32, #tpu.memory_space<vmem>>, vector<1x128xf32>
    %19 = vector.broadcast %18 : vector<1x128xf32> to vector<8x128xf32>
    %20 = arith.addf %17, %19 : vector<8x128xf32>
    %cst_13 = arith.constant 0.000000e+00 : f32
    %21 = vector.broadcast %cst_13 : f32 to vector<8x128xf32>
    %22 = arith.cmpf ogt, %20, %21 : vector<8x128xf32>
    %cst_14 = arith.constant 0.000000e+00 : f32
    %23 = vector.broadcast %cst_14 : f32 to vector<8x128xf32>
    %24 = arith.minimumf %20, %23 : vector<8x128xf32>
    %25 = math.exp %24 : vector<8x128xf32>
    %cst_15 = arith.constant 1.000000e+00 : f32
    %26 = vector.broadcast %cst_15 : f32 to vector<8x128xf32>
    %27 = arith.subf %25, %26 : vector<8x128xf32>
    %28 = arith.select %22, %20, %27 : vector<8x128xi1>, vector<8x128xf32>
    %29 = arith.truncf %28 : vector<8x128xf32> to vector<8x128xbf16>
    %c0_16 = arith.constant 0 : index
    %c0_17 = arith.constant 0 : index
    %30 = vector.load %arg6[%c0_16, %c0_17] : memref<128x10xbf16, #tpu.memory_space<vmem>>, vector<128x10xbf16>
    %cst_18 = arith.constant dense<0.000000e+00> : vector<8x10xf32>
    %31 = tpu.matmul %29, %30, %cst_18 {dimension_numbers = #tpu.dot_dimension_numbers<[1], [0], [0], [1], [0, 0, 1, 1], [], []>} : vector<8x128xbf16>, vector<128x10xbf16>, vector<8x10xf32> -> vector<8x10xf32>
    %c0_19 = arith.constant 0 : index
    %c0_20 = arith.constant 0 : index
    %32 = vector.load %arg7[%c0_19, %c0_20] : memref<1x10xf32, #tpu.memory_space<vmem>>, vector<1x10xf32>
    %33 = vector.broadcast %32 : vector<1x10xf32> to vector<8x10xf32>
    %34 = arith.addf %31, %33 : vector<8x10xf32>
    %cst_21 = arith.constant dense<0xFF800000> : vector<8xf32>
    %35 = vector.multi_reduction <maximumf>, %34, %cst_21 [1] : vector<8x10xf32> to vector<8xf32>
    %36 = vector.shape_cast %35 : vector<8xf32> to vector<8x1xf32>
    %37 = vector.broadcast %36 : vector<8x1xf32> to vector<8x10xf32>
    %38 = arith.subf %34, %37 : vector<8x10xf32>
    %39 = math.exp %38 : vector<8x10xf32>
    %cst_22 = arith.constant dense<0.000000e+00> : vector<8xf32>
    %40 = vector.multi_reduction <add>, %39, %cst_22 [1] : vector<8x10xf32> to vector<8xf32>
    %41 = vector.shape_cast %40 : vector<8xf32> to vector<8x1xf32>
    %42 = vector.broadcast %41 : vector<8x1xf32> to vector<8x10xf32>
    %43 = arith.divf %39, %42 : vector<8x10xf32>
    %c0_23 = arith.constant 0 : index
    %c0_24 = arith.constant 0 : index
    %44 = vector.load %arg8[%c0_23, %c0_24] : memref<8x10xf32, #tpu.memory_space<vmem>>, vector<8x10xf32>
    tpu.vector_store %arg8[%c0_23, %c0_24], %43 {strides = array<i32>} : memref<8x10xf32, #tpu.memory_space<vmem>>, vector<8x10xf32>,
    return
  }
  func.func @transform_0(%arg0: i32) -> (i32, i32) {
    %c0_i32 = arith.constant 0 : i32
    %c0_i32_0 = arith.constant 0 : i32
    return %arg0, %c0_i32 : i32, i32
  }
  func.func @transform_1(%arg0: i32) -> (i32, i32) {
    %c0_i32 = arith.constant 0 : i32
    %c0_i32_0 = arith.constant 0 : i32
    %c0_i32_1 = arith.constant 0 : i32
    return %c0_i32, %c0_i32_0 : i32, i32
  }
  func.func @transform_2(%arg0: i32) -> (i32, i32) {
    %c0_i32 = arith.constant 0 : i32
    %c0_i32_0 = arith.constant 0 : i32
    %c0_i32_1 = arith.constant 0 : i32
    return %c0_i32, %c0_i32_0 : i32, i32
  }
  func.func @transform_3(%arg0: i32) -> (i32, i32) {
    %c0_i32 = arith.constant 0 : i32
    %c0_i32_0 = arith.constant 0 : i32
    %c0_i32_1 = arith.constant 0 : i32
    return %c0_i32, %c0_i32_0 : i32, i32
  }
  func.func @transform_4(%arg0: i32) -> (i32, i32) {
    %c0_i32 = arith.constant 0 : i32
    %c0_i32_0 = arith.constant 0 : i32
    %c0_i32_1 = arith.constant 0 : i32
    return %c0_i32, %c0_i32_0 : i32, i32
  }
  func.func @transform_5(%arg0: i32) -> (i32, i32) {
    %c0_i32 = arith.constant 0 : i32
    %c0_i32_0 = arith.constant 0 : i32
    %c0_i32_1 = arith.constant 0 : i32
    return %c0_i32, %c0_i32_0 : i32, i32
  }
  func.func @transform_6(%arg0: i32) -> (i32, i32) {
    %c0_i32 = arith.constant 0 : i32
    %c0_i32_0 = arith.constant 0 : i32
    %c0_i32_1 = arith.constant 0 : i32
    return %c0_i32, %c0_i32_0 : i32, i32
  }
  func.func @transform_7(%arg0: i32) -> (i32, i32) {
    %c0_i32 = arith.constant 0 : i32
    %c0_i32_0 = arith.constant 0 : i32
    return %arg0, %c0_i32 : i32, i32
  }
}

</mosaic_0001>

<llo_original>
// kernel: tpu_custom_call.1
$region0: #{tpu_custom_call.1}
  #allocation0 [shape = 'u32[]', space=smem, size = 0x4, offset = 0x4, fixed_abs, tag = 'smem constant byte address 0x4 - core index']
  #allocation1 [shape = 'u32[144,128]{1,0:T(1,128)}', space=vmem, size = 0x12000, scoped, tag = 'internal scratch']
  %s0 = inlined_call_operand.vmem [shape: f32[16,64], index: 0, kind: input, shape index: {}]
  %s1 = inlined_call_operand.hbm [shape: bf16[64,128], index: 1, kind: input, shape index: {}]
  %s2 = inlined_call_operand.vmem [shape: f32[1,128], index: 2, kind: input, shape index: {}]
  %s3 = inlined_call_operand.vmem [shape: bf16[128,128], index: 3, kind: input, shape index: {}]
  %s4 = inlined_call_operand.vmem [shape: f32[1,128], index: 4, kind: input, shape index: {}]
  %s5 = inlined_call_operand.vmem [shape: bf16[128,10], index: 5, kind: input, shape index: {}]
  %s6 = inlined_call_operand.vmem [shape: f32[1,10], index: 6, kind: input, shape index: {}]
  %s7 = inlined_call_operand.hbm [shape: f32[16,10], index: 7, kind: output, shape index: {}]
  %s8 = sld [smem:[#allocation0]]
  $region65: #{tpu_custom_call.1} parent=0
    _
  %s10 = ssub.s32 1, %s8
  %s11 = scalar_select 0, %s10, %s8
  $region1: #{tpu_custom_call.1} parent=0
    #allocation2 [shape = 'u8[16384]{0}', space=vmem, size = 0x4000, scoped, tag = 'input window, operand 1, single buffered']
    #allocation3 [shape = 's32[2]{0}', space=sflag, size = 0x8, scoped, tag = 'scoped memory for tpu_custom_call.1']
    #allocation4 [shape = 's32[2]{0}', space=sflag, size = 0x8, scoped, tag = 'scoped memory for tpu_custom_call.1']
    #allocation5 [shape = 'u8[8192]{0}', space=vmem, size = 0x2000, scoped, tag = 'output window, operand 0']
    %12 = vsyncpa [#allocation3], 0
    %13 = vsyncpa [#allocation4], 0
    %s14 = scalar_lea.sflag [#allocation4], 1
    %15 = vsyncpa %s14, 0
    loop: start=0, step=1, limit=4
    $region2: #{tpu_custom_call.1} parent=1 // loop_pre_header
      _
    $region3: #{tpu_custom_call.1} parent=1 // loop_header
      %s17 = sphi 0, %s21
      %p18 = scmp.ge.s32.totalorder %s17, 4
      %s27 = sphi 0, %s29
      %s30 = sphi 0, %s27
      %s31 = sphi 0, %s30
      %s47 = sphi 0, %s31
      %s51 = sphi 0, %s51
      %s53 = sphi 0, %s51
      %s54 = sphi 0, %s53
      %s68 = sphi 0, %s54
      %s72 = sphi 0, %s72
      %s74 = sphi 0, %s72
      %s75 = sphi 0, %s74
      %s89 = sphi 0, %s75
      %s93 = sphi 0, %s93
      %s95 = sphi 0, %s93
      %s96 = sphi 0, %s95
      %s110 = sphi 0, %s96
      %s114 = sphi 0, %s114
      %s116 = sphi 0, %s114
      %s117 = sphi 0, %s116
      %s131 = sphi 0, %s117
      %s135 = sphi 0, %s135
      %s137 = sphi 0, %s135
      %s138 = sphi 0, %s137
      %s152 = sphi 0, %s138
      %s156 = sphi 0, %s156
      %s158 = sphi 0, %s156
      %s159 = sphi 0, %s158
      %s173 = sphi 0, %s159
      %s179 = sphi 0, %s181
      %s182 = sphi 0, %s179
      %s183 = sphi 0, %s182
      %s199 = sphi 0, %s183
    $region4: #{tpu_custom_call.1} parent=1 // loop_header_branch
      %20 = sbr.rel (%p18) target = $region8
    $region5: #{tpu_custom_call.1} parent=1 // loop_body
      %s22 = ssub.s32 %s17, 1
      %s23 = ssub.s32 %s17, 2
      %s24 = sadd.s32 %s17, 1
      %s25 = ssub.s32 %s17, %s24
      %p26 = scmp.eq.s32.totalorder %s25, 0
      %s28 = sadd.s32 %s27, 1
      %s29 = scalar_select %p26, %s27, %s28
      %p32 = pneg %p26
      %p33 = scmp.eq.s32.totalorder %s17, 1
      %p34 = por %p32, %p33
      %p35 = scmp.ne.s32.totalorder %s27, %s30
      %p36 = scmp.eq.s32.totalorder %s17, 0
      %p37 = por %p35, %p36
      %p38 = scmp.ne.s32.totalorder %s27, %s30
      %p39 = scmp.eq.s32.totalorder %s22, 1
      %p40 = por %p38, %p39
      %p41 = scmp.ne.s32.totalorder %s30, %s31
      %p42 = scmp.eq.s32.totalorder %s22, 0
      %p43 = por %p41, %p42
      %p44 = scmp.ne.s32.totalorder %s30, %s31
      %p45 = scmp.eq.s32.totalorder %s23, 1
      %p46 = por %p44, %p45
      %p48 = scmp.ne.s32.totalorder %s31, %s47
      %p49 = scmp.eq.s32.totalorder %s23, 0
      %p50 = por %p48, %p49
      %s52 = sadd.s32 %s51, 1
      %p55 = scmp.eq.s32.totalorder %s17, 1
      %p56 = scmp.ne.s32.totalorder %s51, %s53
      %p57 = scmp.eq.s32.totalorder %s17, 0
      %p58 = por %p56, %p57
      %p59 = scmp.ne.s32.totalorder %s51, %s53
      %p60 = scmp.eq.s32.totalorder %s22, 1
      %p61 = por %p59, %p60
      %p62 = scmp.ne.s32.totalorder %s53, %s54
      %p63 = scmp.eq.s32.totalorder %s22, 0
      %p64 = por %p62, %p63
      %p65 = scmp.ne.s32.totalorder %s53, %s54
      %p66 = scmp.eq.s32.totalorder %s23, 1
      %p67 = por %p65, %p66
      %p69 = scmp.ne.s32.totalorder %s54, %s68
      %p70 = scmp.eq.s32.totalorder %s23, 0
      %p71 = por %p69, %p70
      %s73 = sadd.s32 %s72, 1
      %p76 = scmp.eq.s32.totalorder %s17, 1
      %p77 = scmp.ne.s32.totalorder %s72, %s74
      %p78 = scmp.eq.s32.totalorder %s17, 0
      %p79 = por %p77, %p78
      %p80 = scmp.ne.s32.totalorder %s72, %s74
      %p81 = scmp.eq.s32.totalorder %s22, 1
      %p82 = por %p80, %p81
      %p83 = scmp.ne.s32.totalorder %s74, %s75
      %p84 = scmp.eq.s32.totalorder %s22, 0
      %p85 = por %p83, %p84
      %p86 = scmp.ne.s32.totalorder %s74, %s75
      %p87 = scmp.eq.s32.totalorder %s23, 1
      %p88 = por %p86, %p87
      %p90 = scmp.ne.s32.totalorder %s75, %s89
      %p91 = scmp.eq.s32.totalorder %s23, 0
      %p92 = por %p90, %p91
      %s94 = sadd.s32 %s93, 1
      %p97 = scmp.eq.s32.totalorder %s17, 1
      %p98 = scmp.ne.s32.totalorder %s93, %s95
      %p99 = scmp.eq.s32.totalorder %s17, 0
      %p100 = por %p98, %p99
      %p101 = scmp.ne.s32.totalorder %s93, %s95
      %p102 = scmp.eq.s32.totalorder %s22, 1
      %p103 = por %p101, %p102
      %p104 = scmp.ne.s32.totalorder %s95, %s96
      %p105 = scmp.eq.s32.totalorder %s22, 0
      %p106 = por %p104, %p105
      %p107 = scmp.ne.s32.totalorder %s95, %s96
      %p108 = scmp.eq.s32.totalorder %s23, 1
      %p109 = por %p107, %p108
      %p111 = scmp.ne.s32.totalorder %s96, %s110
      %p112 = scmp.eq.s32.totalorder %s23, 0
      %p113 = por %p111, %p112
      %s115 = sadd.s32 %s114, 1
      %p118 = scmp.eq.s32.totalorder %s17, 1
      %p119 = scmp.ne.s32.totalorder %s114, %s116
      %p120 = scmp.eq.s32.totalorder %s17, 0
      %p121 = por %p119, %p120
      %p122 = scmp.ne.s32.totalorder %s114, %s116
      %p123 = scmp.eq.s32.totalorder %s22, 1
      %p124 = por %p122, %p123
      %p125 = scmp.ne.s32.totalorder %s116, %s117
      %p126 = scmp.eq.s32.totalorder %s22, 0
      %p127 = por %p125, %p126
      %p128 = scmp.ne.s32.totalorder %s116, %s117
      %p129 = scmp.eq.s32.totalorder %s23, 1
      %p130 = por %p128, %p129
      %p132 = scmp.ne.s32.totalorder %s117, %s131
      %p133 = scmp.eq.s32.totalorder %s23, 0
      %p134 = por %p132, %p133
      %s136 = sadd.s32 %s135, 1
      %p139 = scmp.eq.s32.totalorder %s17, 1
      %p140 = scmp.ne.s32.totalorder %s135, %s137
      %p141 = scmp.eq.s32.totalorder %s17, 0
      %p142 = por %p140, %p141
      %p143 = scmp.ne.s32.totalorder %s135, %s137
      %p144 = scmp.eq.s32.totalorder %s22, 1
      %p145 = por %p143, %p144
      %p146 = scmp.ne.s32.totalorder %s137, %s138
      %p147 = scmp.eq.s32.totalorder %s22, 0
      %p148 = por %p146, %p147
      %p149 = scmp.ne.s32.totalorder %s137, %s138
      %p150 = scmp.eq.s32.totalorder %s23, 1
      %p151 = por %p149, %p150
      %p153 = scmp.ne.s32.totalorder %s138, %s152
      %p154 = scmp.eq.s32.totalorder %s23, 0
      %p155 = por %p153, %p154
      %s157 = sadd.s32 %s156, 1
      %p160 = scmp.eq.s32.totalorder %s17, 1
      %p161 = scmp.ne.s32.totalorder %s156, %s158
      %p162 = scmp.eq.s32.totalorder %s17, 0
      %p163 = por %p161, %p162
      %p164 = scmp.ne.s32.totalorder %s156, %s158
      %p165 = scmp.eq.s32.totalorder %s22, 1
      %p166 = por %p164, %p165
      %p167 = scmp.ne.s32.totalorder %s158, %s159
      %p168 = scmp.eq.s32.totalorder %s22, 0
      %p169 = por %p167, %p168
      %p170 = scmp.ne.s32.totalorder %s158, %s159
      %p171 = scmp.eq.s32.totalorder %s23, 1
      %p172 = por %p170, %p171
      %p174 = scmp.ne.s32.totalorder %s159, %s173
      %p175 = scmp.eq.s32.totalorder %s23, 0
      %p176 = por %p174, %p175
      %s177 = ssub.s32 %s17, %s24
      %p178 = scmp.eq.s32.totalorder %s177, 0
      %s180 = sadd.s32 %s179, 1
      %s181 = scalar_select %p178, %s179, %s180
      %p184 = pneg %p178
      %p185 = scmp.eq.s32.totalorder %s17, 1
      %p186 = por %p184, %p185
      %p187 = scmp.ne.s32.totalorder %s179, %s182
      %p188 = scmp.eq.s32.totalorder %s17, 0
      %p189 = por %p187, %p188
      %p190 = scmp.ne.s32.totalorder %s179, %s182
      %p191 = scmp.eq.s32.totalorder %s22, 1
      %p192 = por %p190, %p191
      %p193 = scmp.ne.s32.totalorder %s182, %s183
      %p194 = scmp.eq.s32.totalorder %s22, 0
      %p195 = por %p193, %p194
      %p196 = scmp.ne.s32.totalorder %s182, %s183
      %p197 = scmp.eq.s32.totalorder %s23, 1
      %p198 = por %p196, %p197
      %p200 = scmp.ne.s32.totalorder %s183, %s199
      %p201 = scmp.eq.s32.totalorder %s23, 0
      %p202 = por %p200, %p201
      %p203 = scmp.le.s32.totalorder 1, %s17
      %p204 = scmp.lt.s32.totalorder %s17, 3
      %p205 = pnand %p203, %p204
      %p206 = pneg %p205
      // Predicated region
      $region9: #{tpu_custom_call.1} parent=5 // pred_check
        _
      $region10: #{tpu_custom_call.1} parent=5 // pred_check_branch
        %208 = sbr.rel (%p205) target = $region12
      $region11: #{tpu_custom_call.1} parent=5 // pred_region
        %s209 = ssub.s32 %s17, 1
        // Predicated region
        $region13: #{tpu_custom_call.1} parent=11 // pred_check
          %p210 = pneg %p64
        $region14: #{tpu_custom_call.1} parent=11 // pred_check_branch
          %212 = sbr.rel (%p210) target = $region16
        $region15: #{tpu_custom_call.1} parent=11 // pred_region
          %s214 = ssub.s32 512, 512
          %215 = vsyncadd [#allocation3], %s214
          %s216 = sshll.u32 [#allocation2], 4
          %s217 = int_to_ptr.vmem [resolvable:$true] %s216
          %222 = dma.hbm_to_vmem [thread:$0]  %s1, 512, %s217, [#allocation3], 64, 64, 4
        $region16: #{tpu_custom_call.1} parent=11 // pred_fallthru
          _
        // Predicated region
        $region17: #{tpu_custom_call.1} parent=11 // pred_check
          %p223 = pneg %p85
        $region18: #{tpu_custom_call.1} parent=11 // pred_check_branch
          %225 = sbr.rel (%p223) target = $region20
        $region19: #{tpu_custom_call.1} parent=11 // pred_region
          _
        $region20: #{tpu_custom_call.1} parent=11 // pred_fallthru
          _
        // Predicated region
        $region21: #{tpu_custom_call.1} parent=11 // pred_check
          %p226 = pneg %p106
        $region22: #{tpu_custom_call.1} parent=11 // pred_check_branch
          %228 = sbr.rel (%p226) target = $region24
        $region23: #{tpu_custom_call.1} parent=11 // pred_region
          _
        $region24: #{tpu_custom_call.1} parent=11 // pred_fallthru
          _
        // Predicated region
        $region25: #{tpu_custom_call.1} parent=11 // pred_check
          %p229 = pneg %p127
        $region26: #{tpu_custom_call.1} parent=11 // pred_check_branch
          %231 = sbr.rel (%p229) target = $region28
        $region27: #{tpu_custom_call.1} parent=11 // pred_region
          _
        $region28: #{tpu_custom_call.1} parent=11 // pred_fallthru
          _
        // Predicated region
        $region29: #{tpu_custom_call.1} parent=11 // pred_check
          %p232 = pneg %p148
        $region30: #{tpu_custom_call.1} parent=11 // pred_check_branch
          %234 = sbr.rel (%p232) target = $region32
        $region31: #{tpu_custom_call.1} parent=11 // pred_region
          _
        $region32: #{tpu_custom_call.1} parent=11 // pred_fallthru
          _
        // Predicated region
        $region33: #{tpu_custom_call.1} parent=11 // pred_check
          %p235 = pneg %p169
        $region34: #{tpu_custom_call.1} parent=11 // pred_check_branch
          %237 = sbr.rel (%p235) target = $region36
        $region35: #{tpu_custom_call.1} parent=11 // pred_region
          _
        $region36: #{tpu_custom_call.1} parent=11 // pred_fallthru
          _
      $region12: #{tpu_custom_call.1} parent=5 // pred_fallthru
        _
      %p238 = scmp.lt.s32.totalorder %s17, 2
      // Predicated region
      $region37: #{tpu_custom_call.1} parent=5 // pred_check
        %p239 = pneg %p238
      $region38: #{tpu_custom_call.1} parent=5 // pred_check_branch
        %241 = sbr.rel (%p239) target = $region40
      $region39: #{tpu_custom_call.1} parent=5 // pred_region
        // Predicated region
        $region41: #{tpu_custom_call.1} parent=39 // pred_check
          %p242 = pneg %p37
        $region42: #{tpu_custom_call.1} parent=39 // pred_check_branch
          %244 = sbr.rel (%p242) target = $region44
        $region43: #{tpu_custom_call.1} parent=39 // pred_region
          %p245 = scmp.lt.s32.totalorder %s17, 1
          %s246 = scalar_select %p245, %s17, 1
          %s247 = smul.addr %s246, 8
          %s248 = scalar_lea.vmem %s0, %s247
        $region44: #{tpu_custom_call.1} parent=39 // pred_fallthru
          _
      $region40: #{tpu_custom_call.1} parent=5 // pred_fallthru
        _
      %p249 = scmp.le.s32.totalorder 1, %s17
      %p250 = scmp.lt.s32.totalorder %s17, 3
      %p251 = pnand %p249, %p250
      %p252 = pneg %p251
      // Predicated region
      $region45: #{tpu_custom_call.1} parent=5 // pred_check
        _
      $region46: #{tpu_custom_call.1} parent=5 // pred_check_branch
        %254 = sbr.rel (%p251) target = $region48
      $region47: #{tpu_custom_call.1} parent=5 // pred_region
        %s255 = ssub.s32 %s17, 1
        // Predicated region
        $region49: #{tpu_custom_call.1} parent=47 // pred_check
          %p256 = pneg %p64
        $region50: #{tpu_custom_call.1} parent=47 // pred_check_branch
          %258 = sbr.rel (%p256) target = $region52
        $region51: #{tpu_custom_call.1} parent=47 // pred_region
          %259 = dma.done [#allocation3], 512
        $region52: #{tpu_custom_call.1} parent=47 // pred_fallthru
          _
        %p260 = scmp.lt.s32.totalorder %s22, 1
        %s261 = scalar_select %p260, %s22, 1
        %s262 = smul.addr %s261, 8
        %s263 = scalar_lea.vmem %s0, %s262
        %p264 = pneg %p43
        %p265 = pneg %p40
        %p266 = pneg %p64
        %p267 = pneg %p61
        %p268 = pneg %p85
        %p269 = pneg %p82
        %p270 = pneg %p106
        %p271 = pneg %p103
        %p272 = pneg %p127
        %p273 = pneg %p124
        %p274 = pneg %p148
        %p275 = pneg %p145
        %p276 = pneg %p169
        %p277 = pneg %p166
        %p278 = pneg %p195
        %p279 = pneg %p192
        %s280 = sand.u32 %s182, 1
        %s281 = scalar_lea.sflag [#allocation4], %s280
        %s282 = sand.u32 %s182, 1
        %s283 = smul.addr %s282, 8
        %s284 = scalar_lea.vmem [#allocation5], %s283
        %p285 = scmp.lt.s32.totalorder %s22, 1
        %s286 = scalar_select %p285, %s22, 1
        %s287 = smul.addr %s286, 8
        %s288 = scalar_lea.vmem %s0, %s287
        %v290 = vld [vmem:[%s288] sm:$0xff]
        %v291 = vpack.c.bf16 %v290, %v290
        %v292 = vld [vmem:[#allocation2] sm:$0xf]
        %v293 = vld [vmem:[#allocation2 + $0x4] sm:$0xf]
        %v294 = vld [vmem:[#allocation2 + $0x8] sm:$0xf]
        %v295 = vld [vmem:[#allocation2 + $0xc] sm:$0xf]
        %v296 = vld [vmem:[#allocation2 + $0x10] sm:$0xf]
        %v297 = vld [vmem:[#allocation2 + $0x14] sm:$0xf]
        %v298 = vld [vmem:[#allocation2 + $0x18] sm:$0xf]
        %v299 = vld [vmem:[#allocation2 + $0x1c] sm:$0xf]
        %v300 = vld [vmem:[%s2] sm:$0x1]
        %v302 = vlaneseq
        %v303 = vshrl.u32 %v302, 7
        %v304 = vsub.s32 0, %v303
        %v305 = vrot.slane %v300, %v304
        %v315 = vunpack.c.l.b16 %v292
        %v316 = vunpack.c.l.b16 %v293
        %v317 = vunpack.c.l.b16 %v294
        %v318 = vunpack.c.l.b16 %v295
        %v319 = vunpack.c.l.b16 %v296
        %v320 = vunpack.c.l.b16 %v297
        %v321 = vunpack.c.l.b16 %v298
        %v322 = vunpack.c.l.b16 %v299
        %v323 = vpack.c.b16 %v316, %v315
        %v324 = vpack.c.b16 %v318, %v317
        %v325 = vpack.c.b16 %v320, %v319
        %v326 = vpack.c.b16 %v322, %v321
        %vm331 = vcmask 523264
        %v333 = vsel %vm331, %v291, 0
        %335 = vmatprep.subr.bf16.mxu0 0
        %336 = vmatpush1.bf16.msra.mxu0 %v323
        %337 = vmatprep.subr.bf16.mxu0 0
        %338 = vmatpush1.bf16.msra.mxu0 %v324
        %339 = vmatprep.subr.bf16.mxu0 0
        %340 = vmatpush1.bf16.msra.mxu0 %v325
        %341 = vmatprep.subr.bf16.mxu0 0
        %342 = vmatpush1.bf16.msra.mxu0 %v326
        %343 = vmatprep.subr.bf16.mxu0 0
        %344 = vmatpush1.bf16.msra.mxu0 0
        %345 = vmatprep.subr.bf16.mxu0 0
        %346 = vmatpush1.bf16.msra.mxu0 0
        %347 = vmatprep.subr.bf16.mxu0 0
        %348 = vmatpush1.bf16.msra.mxu0 0
        %349 = vmatprep.subr.bf16.mxu0 0
        %350 = vmatpush1.bf16.msra.mxu0 0
        %351 = vmatprep.subr.bf16.mxu0 0
        %352 = vmatpush1.bf16.msra.mxu0 0
        %353 = vmatprep.subr.bf16.mxu0 0
        %354 = vmatpush1.bf16.msra.mxu0 0
        %355 = vmatprep.subr.bf16.mxu0 0
        %356 = vmatpush1.bf16.msra.mxu0 0
        %357 = vmatprep.subr.bf16.mxu0 0
        %358 = vmatpush1.bf16.msra.mxu0 0
        %359 = vmatprep.subr.bf16.mxu0 0
        %360 = vmatpush1.bf16.msra.mxu0 0
        %361 = vmatprep.subr.bf16.mxu0 0
        %362 = vmatpush1.bf16.msra.mxu0 0
        %363 = vmatprep.subr.bf16.mxu0 0
        %364 = vmatpush1.bf16.msra.mxu0 0
        %365 = vmatprep.subr.bf16.mxu0 0
        %366 = vmatpush1.bf16.msra.mxu0 0
        %367 = vmatprep.mubr.bf16.mxu0 0
        %368 = vmatmul.mubr.bf16.gmra.mrb[0].mxu0 %v333
        %v369 = vpop.f32.mrb[0].mxu0
        %v370 = vadd.f32 %v305, %v369
        %v371 = vpop.f32.mrb[0].mxu0
        %v372 = vpop.f32.mrb[0].mxu0
        %v373 = vpop.f32.mrb[0].mxu0
        %374 = vdwg.mxu0
        %vm375 = vcmp.gt.f32.partialorder %v370, 0.0
        %v376 = vmin.f32 %v370, 0.0
        %v377 = vmul.f32 %v376, 1.442695
        %v378 = vpow.pop %v377
        %v379 = vsub.f32 %v378, 1.0
        %v380 = vsel %vm375, %v370, %v379
        %v381 = vpack.c.bf16 %v380, %v380
        %v382 = vld [vmem:[%s3] sm:$0xf]
        %v383 = vld [vmem:[%s3 + $0x4] sm:$0xf]
        %v384 = vld [vmem:[%s3 + $0x8] sm:$0xf]
        %v385 = vld [vmem:[%s3 + $0xc] sm:$0xf]
        %v386 = vld [vmem:[%s3 + $0x10] sm:$0xf]
        %v387 = vld [vmem:[%s3 + $0x14] sm:$0xf]
        %v388 = vld [vmem:[%s3 + $0x18] sm:$0xf]
        %v389 = vld [vmem:[%s3 + $0x1c] sm:$0xf]
        %v390 = vld [vmem:[%s3 + $0x20] sm:$0xf]
        %v391 = vld [vmem:[%s3 + $0x24] sm:$0xf]
        %v392 = vld [vmem:[%s3 + $0x28] sm:$0xf]
        %v393 = vld [vmem:[%s3 + $0x2c] sm:$0xf]
        %v394 = vld [vmem:[%s3 + $0x30] sm:$0xf]
        %v395 = vld [vmem:[%s3 + $0x34] sm:$0xf]
        %v396 = vld [vmem:[%s3 + $0x38] sm:$0xf]
        %v397 = vld [vmem:[%s3 + $0x3c] sm:$0xf]
        %v398 = vld [vmem:[%s4] sm:$0x1]
        %v400 = vlaneseq
        %v401 = vshrl.u32 %v400, 7
        %v402 = vsub.s32 0, %v401
        %v403 = vrot.slane %v398, %v402
        %v421 = vunpack.c.l.b16 %v382
        %v422 = vunpack.c.l.b16 %v383
        %v423 = vunpack.c.l.b16 %v384
        %v424 = vunpack.c.l.b16 %v385
        %v425 = vunpack.c.l.b16 %v386
        %v426 = vunpack.c.l.b16 %v387
        %v427 = vunpack.c.l.b16 %v388
        %v428 = vunpack.c.l.b16 %v389
        %v429 = vunpack.c.l.b16 %v390
        %v430 = vunpack.c.l.b16 %v391
        %v431 = vunpack.c.l.b16 %v392
        %v432 = vunpack.c.l.b16 %v393
        %v433 = vunpack.c.l.b16 %v394
        %v434 = vunpack.c.l.b16 %v395
        %v435 = vunpack.c.l.b16 %v396
        %v436 = vunpack.c.l.b16 %v397
        %v437 = vpack.c.b16 %v422, %v421
        %v438 = vpack.c.b16 %v424, %v423
        %v439 = vpack.c.b16 %v426, %v425
        %v440 = vpack.c.b16 %v428, %v427
        %v441 = vpack.c.b16 %v430, %v429
        %v442 = vpack.c.b16 %v432, %v431
        %v443 = vpack.c.b16 %v434, %v433
        %v444 = vpack.c.b16 %v436, %v435
        %453 = vmatprep.subr.bf16.mxu0 0
        %454 = vmatpush1.bf16.msra.mxu0 %v437
        %455 = vmatprep.subr.bf16.mxu0 0
        %456 = vmatpush1.bf16.msra.mxu0 %v438
        %457 = vmatprep.subr.bf16.mxu0 0
        %458 = vmatpush1.bf16.msra.mxu0 %v439
        %459 = vmatprep.subr.bf16.mxu0 0
        %460 = vmatpush1.bf16.msra.mxu0 %v440
        %461 = vmatprep.subr.bf16.mxu0 0
        %462 = vmatpush1.bf16.msra.mxu0 %v441
        %463 = vmatprep.subr.bf16.mxu0 0
        %464 = vmatpush1.bf16.msra.mxu0 %v442
        %465 = vmatprep.subr.bf16.mxu0 0
        %466 = vmatpush1.bf16.msra.mxu0 %v443
        %467 = vmatprep.subr.bf16.mxu0 0
        %468 = vmatpush1.bf16.msra.mxu0 %v444
        %469 = vmatprep.subr.bf16.mxu0 0
        %470 = vmatpush1.bf16.msra.mxu0 0
        %471 = vmatprep.subr.bf16.mxu0 0
        %472 = vmatpush1.bf16.msra.mxu0 0
        %473 = vmatprep.subr.bf16.mxu0 0
        %474 = vmatpush1.bf16.msra.mxu0 0
        %475 = vmatprep.subr.bf16.mxu0 0
        %476 = vmatpush1.bf16.msra.mxu0 0
        %477 = vmatprep.subr.bf16.mxu0 0
        %478 = vmatpush1.bf16.msra.mxu0 0
        %479 = vmatprep.subr.bf16.mxu0 0
        %480 = vmatpush1.bf16.msra.mxu0 0
        %481 = vmatprep.subr.bf16.mxu0 0
        %482 = vmatpush1.bf16.msra.mxu0 0
        %483 = vmatprep.subr.bf16.mxu0 0
        %484 = vmatpush1.bf16.msra.mxu0 0
        %485 = vmatprep.mubr.bf16.mxu0 0
        %486 = vmatmul.mubr.bf16.gmra.mrb[0].mxu0 %v381
        %v487 = vpop.f32.mrb[0].mxu0
        %v488 = vadd.f32 %v403, %v487
        %v489 = vpop.f32.mrb[0].mxu0
        %v490 = vpop.f32.mrb[0].mxu0
        %v491 = vpop.f32.mrb[0].mxu0
        %492 = vdwg.mxu0
        %vm493 = vcmp.gt.f32.partialorder %v488, 0.0
        %v494 = vmin.f32 %v488, 0.0
        %v495 = vmul.f32 %v494, 1.442695
        %v496 = vpow.pop %v495
        %v497 = vsub.f32 %v496, 1.0
        %v498 = vsel %vm493, %v488, %v497
        %v499 = vpack.c.bf16 %v498, %v498
        %v500 = vld [vmem:[%s5] sm:$0xf]
        %v501 = vld [vmem:[%s5 + $0x4] sm:$0xf]
        %v502 = vld [vmem:[%s5 + $0x8] sm:$0xf]
        %v503 = vld [vmem:[%s5 + $0xc] sm:$0xf]
        %v504 = vld [vmem:[%s5 + $0x10] sm:$0xf]
        %v505 = vld [vmem:[%s5 + $0x14] sm:$0xf]
        %v506 = vld [vmem:[%s5 + $0x18] sm:$0xf]
        %v507 = vld [vmem:[%s5 + $0x1c] sm:$0xf]
        %v508 = vld [vmem:[%s5 + $0x20] sm:$0xf]
        %v509 = vld [vmem:[%s5 + $0x24] sm:$0xf]
        %v510 = vld [vmem:[%s5 + $0x28] sm:$0xf]
        %v511 = vld [vmem:[%s5 + $0x2c] sm:$0xf]
        %v512 = vld [vmem:[%s5 + $0x30] sm:$0xf]
        %v513 = vld [vmem:[%s5 + $0x34] sm:$0xf]
        %v514 = vld [vmem:[%s5 + $0x38] sm:$0xf]
        %v515 = vld [vmem:[%s5 + $0x3c] sm:$0xf]
        %v516 = vld [vmem:[%s6] sm:$0x1]
        %v518 = vlaneseq
        %v519 = vshrl.u32 %v518, 7
        %v520 = vsub.s32 0, %v519
        %v521 = vrot.slane %v516, %v520
        %v539 = vunpack.c.l.b16 %v500
        %v540 = vunpack.c.l.b16 %v501
        %v541 = vunpack.c.l.b16 %v502
        %v542 = vunpack.c.l.b16 %v503
        %v543 = vunpack.c.l.b16 %v504
        %v544 = vunpack.c.l.b16 %v505
        %v545 = vunpack.c.l.b16 %v506
        %v546 = vunpack.c.l.b16 %v507
        %v547 = vunpack.c.l.b16 %v508
        %v548 = vunpack.c.l.b16 %v509
        %v549 = vunpack.c.l.b16 %v510
        %v550 = vunpack.c.l.b16 %v511
        %v551 = vunpack.c.l.b16 %v512
        %v552 = vunpack.c.l.b16 %v513
        %v553 = vunpack.c.l.b16 %v514
        %v554 = vunpack.c.l.b16 %v515
        %v555 = vpack.c.b16 %v540, %v539
        %v556 = vpack.c.b16 %v542, %v541
        %v557 = vpack.c.b16 %v544, %v543
        %v558 = vpack.c.b16 %v546, %v545
        %v559 = vpack.c.b16 %v548, %v547
        %v560 = vpack.c.b16 %v550, %v549
        %v561 = vpack.c.b16 %v552, %v551
        %v562 = vpack.c.b16 %v554, %v553
        %571 = vmatprep.subr.bf16.mxu0 0
        %572 = vmatpush1.bf16.msra.mxu0 %v555
        %573 = vmatprep.subr.bf16.mxu0 0
        %574 = vmatpush1.bf16.msra.mxu0 %v556
        %575 = vmatprep.subr.bf16.mxu0 0
        %576 = vmatpush1.bf16.msra.mxu0 %v557
        %577 = vmatprep.subr.bf16.mxu0 0
        %578 = vmatpush1.bf16.msra.mxu0 %v558
        %579 = vmatprep.subr.bf16.mxu0 0
        %580 = vmatpush1.bf16.msra.mxu0 %v559
        %581 = vmatprep.subr.bf16.mxu0 0
        %582 = vmatpush1.bf16.msra.mxu0 %v560
        %583 = vmatprep.subr.bf16.mxu0 0
        %584 = vmatpush1.bf16.msra.mxu0 %v561
        %585 = vmatprep.subr.bf16.mxu0 0
        %586 = vmatpush1.bf16.msra.mxu0 %v562
        %587 = vmatprep.subr.bf16.mxu0 0
        %588 = vmatpush1.bf16.msra.mxu0 0
        %589 = vmatprep.subr.bf16.mxu0 0
        %590 = vmatpush1.bf16.msra.mxu0 0
        %591 = vmatprep.subr.bf16.mxu0 0
        %592 = vmatpush1.bf16.msra.mxu0 0
        %593 = vmatprep.subr.bf16.mxu0 0
        %594 = vmatpush1.bf16.msra.mxu0 0
        %595 = vmatprep.subr.bf16.mxu0 0
        %596 = vmatpush1.bf16.msra.mxu0 0
        %597 = vmatprep.subr.bf16.mxu0 0
        %598 = vmatpush1.bf16.msra.mxu0 0
        %599 = vmatprep.subr.bf16.mxu0 0
        %600 = vmatpush1.bf16.msra.mxu0 0
        %601 = vmatprep.subr.bf16.mxu0 0
        %602 = vmatpush1.bf16.msra.mxu0 0
        %603 = vmatprep.mubr.bf16.mxu0 0
        %604 = vmatmul.mubr.bf16.gmra.mrb[0].mxu0 %v499
        %v605 = vpop.f32.mrb[0].mxu0
        %v606 = vadd.f32 %v521, %v605
        %v607 = vpop.f32.mrb[0].mxu0
        %v608 = vpop.f32.mrb[0].mxu0
        %v609 = vpop.f32.mrb[0].mxu0
        %610 = vdwg.mxu0
        %vm611 = vcmask 80896
        %v612 = vsel %vm611, %v606, -inf
        %613 = vmax.xlane.f32.xlu0 %v612
        %v614 = vpop.xlane.xlu0 %613
        %v615 = vsub.f32 %v606, %v614
        %v616 = vmul.f32 %v615, 1.442695
        %v617 = vpow.pop %v616
        %v618 = vsel %vm611, %v617, 0.0
        %619 = vadd.xlane.f32.xlu0 %v618
        %v620 = vpop.xlane.xlu0 %619
        %v621 = vrcp.pop %v620
        %v622 = vmul.f32 %v617, %v621
        %623 = vst.msk [vmem:[%s284] sm:$0xff] %vm611, %v622
        %s624 = sand.u32 %s182, 1
        %s625 = scalar_lea.sflag [#allocation4], %s624
        %s626 = sand.u32 %s182, 1
        %s627 = smul.addr %s626, 8
        %s628 = scalar_lea.vmem [#allocation5], %s627
        // Predicated region
        $region53: #{tpu_custom_call.1} parent=47 // pred_check
          %p629 = pneg %p192
        $region54: #{tpu_custom_call.1} parent=47 // pred_check_branch
          %631 = sbr.rel (%p629) target = $region56
        $region55: #{tpu_custom_call.1} parent=47 // pred_region
          %s633 = ssub.s32 128, 128
          %634 = vsyncadd %s625, %s633
          %s635 = smul.addr %s22, 128
          %s636 = scalar_lea.hbm %s7, %s635
          %s638 = sshll.u32 %s628, 4
          %s639 = int_to_ptr.vmem [resolvable:$true] %s638
          %641 = dma.vmem_to_hbm [thread:$0]  %s639, 128, %s636, %s625
        $region56: #{tpu_custom_call.1} parent=47 // pred_fallthru
          _
      $region48: #{tpu_custom_call.1} parent=5 // pred_fallthru
        _
      %p642 = scmp.le.s32.totalorder 2, %s17
      // Predicated region
      $region57: #{tpu_custom_call.1} parent=5 // pred_check
        %p643 = pneg %p642
      $region58: #{tpu_custom_call.1} parent=5 // pred_check_branch
        %645 = sbr.rel (%p643) target = $region60
      $region59: #{tpu_custom_call.1} parent=5 // pred_region
        %s646 = ssub.s32 %s17, 2
        // Predicated region
        $region61: #{tpu_custom_call.1} parent=59 // pred_check
          %p647 = pneg %p198
        $region62: #{tpu_custom_call.1} parent=59 // pred_check_branch
          %649 = sbr.rel (%p647) target = $region64
        $region63: #{tpu_custom_call.1} parent=59 // pred_region
          %s650 = sand.u32 %s183, 1
          %s651 = scalar_lea.sflag [#allocation4], %s650
          %s652 = sand.u32 %s183, 1
          %s653 = smul.addr %s652, 8
          %s654 = scalar_lea.vmem [#allocation5], %s653
          %655 = dma.done %s651, 128
        $region64: #{tpu_custom_call.1} parent=59 // pred_fallthru
          _
      $region60: #{tpu_custom_call.1} parent=5 // pred_fallthru
        _
    $region6: #{tpu_custom_call.1} parent=1 // loop_footer
      %s21 = sadd.s32 1, %s17
    $region7: #{tpu_custom_call.1} parent=1 // loop_footer_branch
      %16 = sbr.rel target = $region3
    $region8: #{tpu_custom_call.1} parent=1 // loop_exit
      _
    %656 = vsyncpa [#allocation3], 1
    %s657 = scalar_lea.sflag [#allocation3], 1
    %658 = vsyncpa %s657, 1
    %659 = vsyncpa [#allocation4], 1
    %s660 = scalar_lea.sflag [#allocation4], 1
    %661 = vsyncpa %s660, 1

</llo_original>
